<compile_context>
chip_gen: v5e
topology: v5e:2x2
jax: 0.10.0
libtpu: 0.0.40
codegen_flags: <defaults>
</compile_context>

<pallas_src>
import jax
import jax.numpy as jnp
from jax.experimental import pallas as pl
from jax.experimental.pallas import tpu as pltpu


_MAX_TB = 1024     # rows per batch tile in the throughput regime
_SMALL_B = 256     # up to this many rows: a single full-extent tile


def _round_up(x, m):
    return (x + m - 1) // m * m


def _tiling(batch):
    """Adaptive batch tiling -> (tile_rows, padded_rows, num_tiles)."""
    batch = max(int(batch), 1)
    if batch <= _SMALL_B:
        # Latency regime: one full-extent tile, no padded rows at all.
        return batch, batch, 1
    # Throughput regime: 128-row-aligned tiles of up to _MAX_TB rows, and at
    # least 2 grid steps so v7x's two TensorCores both get work.
    tb = min(_MAX_TB, _round_up((batch + 1) // 2, 128))
    bp = _round_up(batch, tb)
    return tb, bp, bp // tb


def _fop_kernel(s_ref, a_ref, w1s_ref, b1s_ref, w1a_ref, b1a_ref,
                w2s_ref, w2a_ref, b2_ref, w3_ref, b3_ref, q_ref):
    # Layer 1: stateNet / actionNet (bf16 MXU matmuls, f32 bias + ReLU).
    hs = jnp.dot(s_ref[...].astype(jnp.bfloat16), w1s_ref[...],
                 preferred_element_type=jnp.float32)
    hs = jnp.maximum(hs + b1s_ref[...], 0.0)                      # [TB,128] f32
    ha = jnp.dot(a_ref[...].astype(jnp.bfloat16), w1a_ref[...],
                 preferred_element_type=jnp.float32)
    ha = jnp.maximum(ha + b1a_ref[...], 0.0)                      # [TB,128] f32

    # Layer 2: concat(hs, ha) @ W2  ==  hs @ W2[:128] + ha @ W2[128:].
    h2 = jnp.dot(hs.astype(jnp.bfloat16), w2s_ref[...],
                 preferred_element_type=jnp.float32)
    h2 = h2 + jnp.dot(ha.astype(jnp.bfloat16), w2a_ref[...],
                      preferred_element_type=jnp.float32)
    h2 = jnp.maximum(h2 + b2_ref[...], 0.0)                       # [TB,512] f32

    # Layer 3: 512 -> 1 on VPU (mul) + XLU (lane reduce), NOT the MXU.
    # Store lane-dense: relayout the [TB,1] column into a [1,TB] row (small
    # XLU transpose) so the output store is lane-contiguous, and fold b3 here.
    q_col = jnp.sum(h2 * w3_ref[...], axis=-1, keepdims=True)     # [TB,1] f32
    q_ref[...] = jnp.transpose(q_col, (1, 0)) + b3_ref[0, 0]      # [1,TB]


@jax.jit
def fop_weighted_network(state, action, packed):
    """q = QNet(concat(relu(state@W1s+b1s), relu(action@W1a+b1a))) -> [B, 1]."""
    B, Sd = state.shape
    Ad = action.shape[1]
    tb, bp, ntiles = _tiling(B)

    if bp != B:  # only in the multi-tile regime; padded rows are sliced off below
        state = jnp.pad(state, ((0, bp - B), (0, 0)))
        action = jnp.pad(action, ((0, bp - B), (0, 0)))

    flops = 2 * bp * (Sd * 128 + Ad * 128 + 256 * 512 + 512)
    bytes_accessed = (bp * (Sd + Ad + 1) * 4                  # streamed rows + q
                      + ((Sd + Ad) * 128 + 256 * 512) * 2     # bf16 weights
                      + (128 + 128 + 512 + 512 + 1) * 4)      # f32 biases / w3 / b3

    q = pl.pallas_call(
        _fop_kernel,
        out_shape=jax.ShapeDtypeStruct((1, bp), jnp.float32),
        grid=(ntiles,),
        in_specs=[
            pl.BlockSpec((tb, Sd), lambda i: (i, 0)),            # state rows (streamed)
            pl.BlockSpec((tb, Ad), lambda i: (i, 0)),            # action rows (streamed)
            pl.BlockSpec((Sd, 128), lambda i: (0, 0)),           # W1s (resident)
            pl.BlockSpec((1, 128), lambda i: (0, 0)),            # b1s
            pl.BlockSpec((Ad, 128), lambda i: (0, 0)),           # W1a
            pl.BlockSpec((1, 128), lambda i: (0, 0)),            # b1a
            pl.BlockSpec((128, 512), lambda i: (0, 0)),          # W2[:128]
            pl.BlockSpec((128, 512), lambda i: (0, 0)),          # W2[128:]
            pl.BlockSpec((1, 512), lambda i: (0, 0)),            # b2
            pl.BlockSpec((1, 512), lambda i: (0, 0)),            # w3 row
            pl.BlockSpec(memory_space=pltpu.MemorySpace.SMEM),   # b3 scalar
        ],
        out_specs=pl.BlockSpec((1, tb), lambda i: (0, i)),       # lane-dense q row
        compiler_params=pltpu.CompilerParams(
            dimension_semantics=("parallel",)),
        cost_estimate=pl.CostEstimate(
            flops=flops, transcendentals=0, bytes_accessed=bytes_accessed),
    )(state, action, packed["w1s"], packed["b1s"], packed["w1a"],
      packed["b1a"], packed["w2s"], packed["w2a"], packed["b2"],
      packed["w3r"], packed["b3"])

    return q[0, :B].reshape(B, 1)


def init_params(key, state_dim, action_dim):
    """PyTorch-Linear-style init (uniform(-1/sqrt(fan_in), +1/sqrt(fan_in)))."""
    ks = jax.random.split(key, 4)

    def lin(k, fan_in, fan_out):
        bound = 1.0 / jnp.sqrt(fan_in)
        kw, kb = jax.random.split(k)
        w = jax.random.uniform(kw, (fan_in, fan_out), jnp.float32, -bound, bound)
        b = jax.random.uniform(kb, (1, fan_out), jnp.float32, -bound, bound)
        return w, b

    w1s, b1s = lin(ks[0], state_dim, 128)
    w1a, b1a = lin(ks[1], action_dim, 128)
    w2, b2 = lin(ks[2], 256, 512)
    w3, b3 = lin(ks[3], 512, 1)
    return dict(w1s=w1s, b1s=b1s, w1a=w1a, b1a=b1a, w2=w2, b2=b2, w3=w3, b3=b3)


def pack_params(raw):
    """One-time weight prep: bf16 matmul operands, W2 split into the two
    128-row halves that multiply hs / ha, w3 as a lane-dense row, b3 scalar."""
    return {
        "w1s": raw["w1s"].astype(jnp.bfloat16),
        "b1s": raw["b1s"].astype(jnp.float32),
        "w1a": raw["w1a"].astype(jnp.bfloat16),
        "b1a": raw["b1a"].astype(jnp.float32),
        "w2s": raw["w2"][:128].astype(jnp.bfloat16),
        "w2a": raw["w2"][128:].astype(jnp.bfloat16),
        "b2": raw["b2"].astype(jnp.float32),
        "w3r": raw["w3"].reshape(1, 512).astype(jnp.float32),
        "b3": raw["b3"].reshape(1, 1).astype(jnp.float32),
    }


def reference(state, action, raw):
    """Pure-JAX f32 reference matching the PyTorch module exactly."""
    h_s = jax.nn.relu(state @ raw["w1s"] + raw["b1s"])
    h_a = jax.nn.relu(action @ raw["w1a"] + raw["b1a"])
    h = jnp.concatenate([h_s, h_a], axis=1)
    h2 = jax.nn.relu(h @ raw["w2"] + raw["b2"])
    return h2 @ raw["w3"] + raw["b3"]


if __name__ == "__main__":
    # Synthetic config: input_shape=16, n_agents=4, n_actions=5
    input_shape, n_agents, n_actions = 16, 4, 5
    state_dim = input_shape * n_agents        # 64
    action_dim = n_actions * n_agents         # 20

    key = jax.random.PRNGKey(0)
    k_data, k_params = jax.random.split(key)
    raw = init_params(k_params, state_dim, action_dim)
    packed = pack_params(raw)

    # B=8   -> single full-extent tile (latency path, no padded rows)
    # B=300 -> two 256-row tiles with batch padding (throughput / megacore path)
    for B in (8, 300):
        ks, ka = jax.random.split(jax.random.fold_in(k_data, B))
        state = jax.random.normal(ks, (B, state_dim), jnp.float32)
        action = jax.random.normal(ka, (B, action_dim), jnp.float32)

        q = jax.block_until_ready(fop_weighted_network(state, action, packed))
        q_ref = reference(state, action, raw)

        assert q.shape == (B, 1), q.shape
        # bf16 matmul operands with f32 accumulation -> relaxed tolerance.
        assert jnp.allclose(q, q_ref, atol=5e-2, rtol=5e-2), (
            B, float(jnp.max(jnp.abs(q - q_ref))))
    print("KERNEL_OK")
</pallas_src>

<mosaic_0001>
module attributes {stable_mosaic.version = 11 : i64} {
  func.func @_fop_kernel(%arg0: i32, %arg1: memref<8x64xf32, #tpu.memory_space<vmem>>, %arg2: memref<8x20xf32, #tpu.memory_space<vmem>>, %arg3: memref<64x128xbf16, #tpu.memory_space<vmem>>, %arg4: memref<1x128xf32, #tpu.memory_space<vmem>>, %arg5: memref<20x128xbf16, #tpu.memory_space<vmem>>, %arg6: memref<1x128xf32, #tpu.memory_space<vmem>>, %arg7: memref<128x512xbf16, #tpu.memory_space<vmem>>, %arg8: memref<128x512xbf16, #tpu.memory_space<vmem>>, %arg9: memref<1x512xf32, #tpu.memory_space<vmem>>, %arg10: memref<1x512xf32, #tpu.memory_space<vmem>>, %arg11: memref<1x1xf32, #tpu.memory_space<smem>>, %arg12: memref<1x8xf32, #tpu.memory_space<vmem>>) attributes {dimension_semantics = [#tpu.dimension_semantics<parallel>], iteration_bounds = array<i64: 1>, scalar_prefetch = 0 : i64, scratch_operands = 0 : i64, tpu.core_type = #tpu.core_type<tc>, window_params = [{transform_indices = @transform_0, window_bounds = array<i64: 8, 64>}, {transform_indices = @transform_1, window_bounds = array<i64: 8, 20>}, {pipeline_mode = #tpu.pipeline_mode<synchronous>, transform_indices = @transform_2, window_bounds = array<i64: 64, 128>}, {pipeline_mode = #tpu.pipeline_mode<synchronous>, transform_indices = @transform_3, window_bounds = array<i64: 1, 128>}, {pipeline_mode = #tpu.pipeline_mode<synchronous>, transform_indices = @transform_4, window_bounds = array<i64: 20, 128>}, {pipeline_mode = #tpu.pipeline_mode<synchronous>, transform_indices = @transform_5, window_bounds = array<i64: 1, 128>}, {pipeline_mode = #tpu.pipeline_mode<synchronous>, transform_indices = @transform_6, window_bounds = array<i64: 128, 512>}, {pipeline_mode = #tpu.pipeline_mode<synchronous>, transform_indices = @transform_7, window_bounds = array<i64: 128, 512>}, {pipeline_mode = #tpu.pipeline_mode<synchronous>, transform_indices = @transform_8, window_bounds = array<i64: 1, 512>}, {pipeline_mode = #tpu.pipeline_mode<synchronous>, transform_indices = @transform_9, window_bounds = array<i64: 1, 512>}, {transform_indices = @transform_10, window_bounds = array<i64: 1, 1>}, {transform_indices = @transform_11, window_bounds = array<i64: 1, 8>}]} {
    %c0 = arith.constant 0 : index
    %c0_0 = arith.constant 0 : index
    %0 = vector.load %arg1[%c0, %c0_0] : memref<8x64xf32, #tpu.memory_space<vmem>>, vector<8x64xf32>
    %1 = arith.truncf %0 : vector<8x64xf32> to vector<8x64xbf16>
    %c0_1 = arith.constant 0 : index
    %c0_2 = arith.constant 0 : index
    %2 = vector.load %arg3[%c0_1, %c0_2] : memref<64x128xbf16, #tpu.memory_space<vmem>>, vector<64x128xbf16>
    %cst = arith.constant dense<0.000000e+00> : vector<8x128xf32>
    %3 = tpu.matmul %1, %2, %cst {dimension_numbers = #tpu.dot_dimension_numbers<[1], [0], [0], [1], [0, 0, 1, 1], [], []>} : vector<8x64xbf16>, vector<64x128xbf16>, vector<8x128xf32> -> vector<8x128xf32>
    %c0_3 = arith.constant 0 : index
    %c0_4 = arith.constant 0 : index
    %4 = vector.load %arg4[%c0_3, %c0_4] : memref<1x128xf32, #tpu.memory_space<vmem>>, vector<1x128xf32>
    %5 = vector.broadcast %4 : vector<1x128xf32> to vector<8x128xf32>
    %6 = arith.addf %3, %5 : vector<8x128xf32>
    %cst_5 = arith.constant 0.000000e+00 : f32
    %7 = vector.broadcast %cst_5 : f32 to vector<8x128xf32>
    %8 = arith.maximumf %6, %7 : vector<8x128xf32>
    %c0_6 = arith.constant 0 : index
    %c0_7 = arith.constant 0 : index
    %9 = vector.load %arg2[%c0_6, %c0_7] : memref<8x20xf32, #tpu.memory_space<vmem>>, vector<8x20xf32>
    %10 = arith.truncf %9 : vector<8x20xf32> to vector<8x20xbf16>
    %c0_8 = arith.constant 0 : index
    %c0_9 = arith.constant 0 : index
    %11 = vector.load %arg5[%c0_8, %c0_9] : memref<20x128xbf16, #tpu.memory_space<vmem>>, vector<20x128xbf16>
    %cst_10 = arith.constant dense<0.000000e+00> : vector<8x128xf32>
    %12 = tpu.matmul %10, %11, %cst_10 {dimension_numbers = #tpu.dot_dimension_numbers<[1], [0], [0], [1], [0, 0, 1, 1], [], []>} : vector<8x20xbf16>, vector<20x128xbf16>, vector<8x128xf32> -> vector<8x128xf32>
    %c0_11 = arith.constant 0 : index
    %c0_12 = arith.constant 0 : index
    %13 = vector.load %arg6[%c0_11, %c0_12] : memref<1x128xf32, #tpu.memory_space<vmem>>, vector<1x128xf32>
    %14 = vector.broadcast %13 : vector<1x128xf32> to vector<8x128xf32>
    %15 = arith.addf %12, %14 : vector<8x128xf32>
    %cst_13 = arith.constant 0.000000e+00 : f32
    %16 = vector.broadcast %cst_13 : f32 to vector<8x128xf32>
    %17 = arith.maximumf %15, %16 : vector<8x128xf32>
    %18 = arith.truncf %8 : vector<8x128xf32> to vector<8x128xbf16>
    %c0_14 = arith.constant 0 : index
    %c0_15 = arith.constant 0 : index
    %19 = vector.load %arg7[%c0_14, %c0_15] : memref<128x512xbf16, #tpu.memory_space<vmem>>, vector<128x512xbf16>
    %cst_16 = arith.constant dense<0.000000e+00> : vector<8x512xf32>
    %20 = tpu.matmul %18, %19, %cst_16 {dimension_numbers = #tpu.dot_dimension_numbers<[1], [0], [0], [1], [0, 0, 1, 1], [], []>} : vector<8x128xbf16>, vector<128x512xbf16>, vector<8x512xf32> -> vector<8x512xf32>
    %21 = arith.truncf %17 : vector<8x128xf32> to vector<8x128xbf16>
    %c0_17 = arith.constant 0 : index
    %c0_18 = arith.constant 0 : index
    %22 = vector.load %arg8[%c0_17, %c0_18] : memref<128x512xbf16, #tpu.memory_space<vmem>>, vector<128x512xbf16>
    %cst_19 = arith.constant dense<0.000000e+00> : vector<8x512xf32>
    %23 = tpu.matmul %21, %22, %cst_19 {dimension_numbers = #tpu.dot_dimension_numbers<[1], [0], [0], [1], [0, 0, 1, 1], [], []>} : vector<8x128xbf16>, vector<128x512xbf16>, vector<8x512xf32> -> vector<8x512xf32>
    %24 = arith.addf %20, %23 : vector<8x512xf32>
    %c0_20 = arith.constant 0 : index
    %c0_21 = arith.constant 0 : index
    %25 = vector.load %arg9[%c0_20, %c0_21] : memref<1x512xf32, #tpu.memory_space<vmem>>, vector<1x512xf32>
    %26 = vector.broadcast %25 : vector<1x512xf32> to vector<8x512xf32>
    %27 = arith.addf %24, %26 : vector<8x512xf32>
    %cst_22 = arith.constant 0.000000e+00 : f32
    %28 = vector.broadcast %cst_22 : f32 to vector<8x512xf32>
    %29 = arith.maximumf %27, %28 : vector<8x512xf32>
    %c0_23 = arith.constant 0 : index
    %c0_24 = arith.constant 0 : index
    %30 = vector.load %arg10[%c0_23, %c0_24] : memref<1x512xf32, #tpu.memory_space<vmem>>, vector<1x512xf32>
    %31 = vector.broadcast %30 : vector<1x512xf32> to vector<8x512xf32>
    %32 = arith.mulf %29, %31 : vector<8x512xf32>
    %cst_25 = arith.constant dense<0.000000e+00> : vector<8xf32>
    %33 = vector.multi_reduction <add>, %32, %cst_25 [1] : vector<8x512xf32> to vector<8xf32>
    %34 = vector.shape_cast %33 : vector<8xf32> to vector<8x1xf32>
    %35 = tpu.transpose %34, [1, 0] : vector<8x1xf32> -> vector<1x8xf32>
    %c0_26 = arith.constant 0 : index
    %c0_27 = arith.constant 0 : index
    %36 = memref.load %arg11[%c0_26, %c0_27] : memref<1x1xf32, #tpu.memory_space<smem>>
    %37 = vector.broadcast %36 : f32 to vector<1x8xf32>
    %38 = arith.addf %35, %37 : vector<1x8xf32>
    %c0_28 = arith.constant 0 : index
    %c0_29 = arith.constant 0 : index
    %39 = vector.load %arg12[%c0_28, %c0_29] : memref<1x8xf32, #tpu.memory_space<vmem>>, vector<1x8xf32>
    tpu.vector_store %arg12[%c0_28, %c0_29], %38 {strides = array<i32>} : memref<1x8xf32, #tpu.memory_space<vmem>>, vector<1x8xf32>,
    return
  }
  func.func @transform_0(%arg0: i32) -> (i32, i32) {
    %c0_i32 = arith.constant 0 : i32
    %c0_i32_0 = arith.constant 0 : i32
    return %arg0, %c0_i32 : i32, i32
  }
  func.func @transform_1(%arg0: i32) -> (i32, i32) {
    %c0_i32 = arith.constant 0 : i32
    %c0_i32_0 = arith.constant 0 : i32
    return %arg0, %c0_i32 : i32, i32
  }
  func.func @transform_2(%arg0: i32) -> (i32, i32) {
    %c0_i32 = arith.constant 0 : i32
    %c0_i32_0 = arith.constant 0 : i32
    %c0_i32_1 = arith.constant 0 : i32
    return %c0_i32, %c0_i32_0 : i32, i32
  }
  func.func @transform_3(%arg0: i32) -> (i32, i32) {
    %c0_i32 = arith.constant 0 : i32
    %c0_i32_0 = arith.constant 0 : i32
    %c0_i32_1 = arith.constant 0 : i32
    return %c0_i32, %c0_i32_0 : i32, i32
  }
  func.func @transform_4(%arg0: i32) -> (i32, i32) {
    %c0_i32 = arith.constant 0 : i32
    %c0_i32_0 = arith.constant 0 : i32
    %c0_i32_1 = arith.constant 0 : i32
    return %c0_i32, %c0_i32_0 : i32, i32
  }
  func.func @transform_5(%arg0: i32) -> (i32, i32) {
    %c0_i32 = arith.constant 0 : i32
    %c0_i32_0 = arith.constant 0 : i32
    %c0_i32_1 = arith.constant 0 : i32
    return %c0_i32, %c0_i32_0 : i32, i32
  }
  func.func @transform_6(%arg0: i32) -> (i32, i32) {
    %c0_i32 = arith.constant 0 : i32
    %c0_i32_0 = arith.constant 0 : i32
    %c0_i32_1 = arith.constant 0 : i32
    return %c0_i32, %c0_i32_0 : i32, i32
  }
  func.func @transform_7(%arg0: i32) -> (i32, i32) {
    %c0_i32 = arith.constant 0 : i32
    %c0_i32_0 = arith.constant 0 : i32
    %c0_i32_1 = arith.constant 0 : i32
    return %c0_i32, %c0_i32_0 : i32, i32
  }
  func.func @transform_8(%arg0: i32) -> (i32, i32) {
    %c0_i32 = arith.constant 0 : i32
    %c0_i32_0 = arith.constant 0 : i32
    %c0_i32_1 = arith.constant 0 : i32
    return %c0_i32, %c0_i32_0 : i32, i32
  }
  func.func @transform_9(%arg0: i32) -> (i32, i32) {
    %c0_i32 = arith.constant 0 : i32
    %c0_i32_0 = arith.constant 0 : i32
    %c0_i32_1 = arith.constant 0 : i32
    return %c0_i32, %c0_i32_0 : i32, i32
  }
  func.func @transform_10(%arg0: i32) -> (i32, i32) {
    %c0_i32 = arith.constant 0 : i32
    %c0_i32_0 = arith.constant 0 : i32
    %c0_i32_1 = arith.constant 0 : i32
    return %c0_i32, %c0_i32_0 : i32, i32
  }
  func.func @transform_11(%arg0: i32) -> (i32, i32) {
    %c0_i32 = arith.constant 0 : i32
    %c0_i32_0 = arith.constant 0 : i32
    return %c0_i32, %arg0 : i32, i32
  }
}

</mosaic_0001>

<llo_original>
// kernel: fop_weighted_network.1
$region0: #{fop_weighted_network.1}
  #allocation0 [shape = 'u32[]', space=smem, size = 0x4, offset = 0x4, fixed_abs, tag = 'smem constant byte address 0x4 - core index']
  #allocation1 [shape = 'u32[72,128]{1,0:T(1,128)}', space=vmem, size = 0x9000, scoped, tag = 'internal scratch']
  #allocation2 [shape = 'f32[1,1]{1,0:T(1,128)S(6)}', space=smem, size = 0x200, scoped, tag = 'scoped memory for fop_weighted_network.1']
  %s0 = inlined_call_operand.hbm [shape: f32[8,64], index: 0, kind: input, shape index: {}]
  %s1 = inlined_call_operand.hbm [shape: f32[8,20], index: 1, kind: input, shape index: {}]
  %s2 = inlined_call_operand.hbm [shape: bf16[64,128], index: 2, kind: input, shape index: {}]
  %s3 = inlined_call_operand.hbm [shape: f32[1,128], index: 3, kind: input, shape index: {}]
  %s4 = inlined_call_operand.hbm [shape: bf16[20,128], index: 4, kind: input, shape index: {}]
  %s5 = inlined_call_operand.hbm [shape: f32[1,128], index: 5, kind: input, shape index: {}]
  %s6 = inlined_call_operand.hbm [shape: bf16[128,512], index: 6, kind: input, shape index: {}]
  %s7 = inlined_call_operand.hbm [shape: bf16[128,512], index: 7, kind: input, shape index: {}]
  %s8 = inlined_call_operand.vmem [shape: f32[1,512], index: 8, kind: input, shape index: {}]
  %s9 = inlined_call_operand.vmem [shape: f32[1,512], index: 9, kind: input, shape index: {}]
  %s10 = inlined_call_operand.<no memory space> [shape: f32[1,1], index: 10, kind: input, shape index: {}]
  %s11 = inlined_call_operand.hbm [shape: f32[1,8], index: 11, kind: output, shape index: {}]
  %s12 = sld [smem:[#allocation0]]
  $region86: #{fop_weighted_network.1} parent=0
    _
  %s14 = ssub.s32 1, %s12
  %s15 = scalar_select 0, %s14, %s12
  %16 = sst [smem:[#allocation2]] %s10
  $region1: #{fop_weighted_network.1} parent=0
    #allocation3 [shape = 'u8[4096]{0}', space=vmem, size = 0x1000, scoped, tag = 'input window, operand 0, single buffered']
    #allocation4 [shape = 's32[1]{0}', space=sflag, size = 0x4, scoped, tag = 'scoped memory for fop_weighted_network.1']
    #allocation5 [shape = 's32[1]{0}', space=sflag, size = 0x4, scoped, tag = 'scoped memory for fop_weighted_network.1']
    #allocation6 [shape = 'u8[4096]{0}', space=vmem, size = 0x1000, scoped, tag = 'input window, operand 1, single buffered']
    #allocation7 [shape = 's32[1]{0}', space=sflag, size = 0x4, scoped, tag = 'scoped memory for fop_weighted_network.1']
    #allocation8 [shape = 'u8[16384]{0}', space=vmem, size = 0x4000, scoped, tag = 'input window, operand 2, single buffered']
    #allocation9 [shape = 'u8[512]{0}', space=vmem, size = 0x400, scoped, tag = 'input window, operand 3, single buffered']
    #allocation10 [shape = 's32[1]{0}', space=sflag, size = 0x4, scoped, tag = 'scoped memory for fop_weighted_network.1']
    #allocation11 [shape = 'u8[6144]{0}', space=vmem, size = 0x1800, scoped, tag = 'input window, operand 4, single buffered']
    #allocation12 [shape = 'u8[512]{0}', space=vmem, size = 0x400, scoped, tag = 'input window, operand 5, single buffered']
    #allocation13 [shape = 's32[1]{0}', space=sflag, size = 0x4, scoped, tag = 'scoped memory for fop_weighted_network.1']
    #allocation14 [shape = 'u8[131072]{0}', space=vmem, size = 0x20000, scoped, tag = 'input window, operand 6, single buffered']
    #allocation15 [shape = 'u8[131072]{0}', space=vmem, size = 0x20000, scoped, tag = 'input window, operand 7, single buffered']
    #allocation16 [shape = 's32[1]{0}', space=sflag, size = 0x4, scoped, tag = 'scoped memory for fop_weighted_network.1']
    #allocation17 [shape = 'u8[512]{0}', space=vmem, size = 0x400, scoped, tag = 'output window, operand 0, single buffered']
    %17 = vsyncpa [#allocation4], 0
    %18 = vsyncpa [#allocation7], 0
    %19 = vsyncpa [#allocation10], 0
    %20 = vsyncpa [#allocation13], 0
    %21 = vsyncpa [#allocation16], 0
    %22 = vsyncpa [#allocation5], 0
    // Predicated region
    $region2: #{fop_weighted_network.1} parent=1 // pred_check
      _
    $region3: #{fop_weighted_network.1} parent=1 // pred_check_branch
      %24 = sbr.rel (0) target = $region5
    $region4: #{fop_weighted_network.1} parent=1 // pred_region
      %26 = vsyncadd [#allocation4], 0
      %s28 = sshll.u32 %s0, 4
      %s29 = int_to_ptr.hbm [resolvable:$true] %s28
      %s30 = sshll.u32 [#allocation3], 4
      %s31 = int_to_ptr.vmem [resolvable:$true] %s30
      %33 = dma.hbm_to_vmem [thread:$0]  %s29, 128, %s31, [#allocation4]
    $region5: #{fop_weighted_network.1} parent=1 // pred_fallthru
      _
    // Predicated region
    $region6: #{fop_weighted_network.1} parent=1 // pred_check
      _
    $region7: #{fop_weighted_network.1} parent=1 // pred_check_branch
      %35 = sbr.rel (0) target = $region9
    $region8: #{fop_weighted_network.1} parent=1 // pred_region
      %37 = vsyncadd [#allocation7], 0
      %s39 = sshll.u32 %s1, 4
      %s40 = int_to_ptr.hbm [resolvable:$true] %s39
      %s41 = sshll.u32 [#allocation6], 4
      %s42 = int_to_ptr.vmem [resolvable:$true] %s41
      %44 = dma.hbm_to_vmem [thread:$0]  %s40, 128, %s42, [#allocation7]
    $region9: #{fop_weighted_network.1} parent=1 // pred_fallthru
      _
    // Predicated region
    $region10: #{fop_weighted_network.1} parent=1 // pred_check
      _
    $region11: #{fop_weighted_network.1} parent=1 // pred_check_branch
      %46 = sbr.rel (0) target = $region13
    $region12: #{fop_weighted_network.1} parent=1 // pred_region
      %48 = vsyncadd [#allocation7], 0
      %s49 = sshll.u32 %s2, 4
      %s50 = int_to_ptr.hbm [resolvable:$true] %s49
      %s51 = sshll.u32 [#allocation8], 4
      %s52 = int_to_ptr.vmem [resolvable:$true] %s51
      %57 = dma.hbm_to_vmem [thread:$0]  %s50, 512, %s52, [#allocation7], 64, 64, 4
    $region13: #{fop_weighted_network.1} parent=1 // pred_fallthru
      _
    // Predicated region
    $region14: #{fop_weighted_network.1} parent=1 // pred_check
      _
    $region15: #{fop_weighted_network.1} parent=1 // pred_check_branch
      %59 = sbr.rel (0) target = $region17
    $region16: #{fop_weighted_network.1} parent=1 // pred_region
      %61 = vsyncadd [#allocation10], 0
      %s63 = sshll.u32 %s3, 4
      %s64 = int_to_ptr.hbm [resolvable:$true] %s63
      %s65 = sshll.u32 [#allocation9], 4
      %s66 = int_to_ptr.vmem [resolvable:$true] %s65
      %68 = dma.hbm_to_vmem [thread:$0]  %s64, 16, %s66, [#allocation10]
    $region17: #{fop_weighted_network.1} parent=1 // pred_fallthru
      _
    // Predicated region
    $region18: #{fop_weighted_network.1} parent=1 // pred_check
      _
    $region19: #{fop_weighted_network.1} parent=1 // pred_check_branch
      %70 = sbr.rel (0) target = $region21
    $region20: #{fop_weighted_network.1} parent=1 // pred_region
      %72 = vsyncadd [#allocation10], 0
      %s73 = sshll.u32 %s4, 4
      %s74 = int_to_ptr.hbm [resolvable:$true] %s73
      %s75 = sshll.u32 [#allocation11], 4
      %s76 = int_to_ptr.vmem [resolvable:$true] %s75
      %81 = dma.hbm_to_vmem [thread:$0]  %s74, 192, %s76, [#allocation10], 64, 64, 4
    $region21: #{fop_weighted_network.1} parent=1 // pred_fallthru
      _
    // Predicated region
    $region22: #{fop_weighted_network.1} parent=1 // pred_check
      _
    $region23: #{fop_weighted_network.1} parent=1 // pred_check_branch
      %83 = sbr.rel (0) target = $region25
    $region24: #{fop_weighted_network.1} parent=1 // pred_region
      %85 = vsyncadd [#allocation13], 0
      %s87 = sshll.u32 %s5, 4
      %s88 = int_to_ptr.hbm [resolvable:$true] %s87
      %s89 = sshll.u32 [#allocation12], 4
      %s90 = int_to_ptr.vmem [resolvable:$true] %s89
      %92 = dma.hbm_to_vmem [thread:$0]  %s88, 16, %s90, [#allocation13]
    $region25: #{fop_weighted_network.1} parent=1 // pred_fallthru
      _
    // Predicated region
    $region26: #{fop_weighted_network.1} parent=1 // pred_check
      _
    $region27: #{fop_weighted_network.1} parent=1 // pred_check_branch
      %94 = sbr.rel (0) target = $region29
    $region28: #{fop_weighted_network.1} parent=1 // pred_region
      %96 = vsyncadd [#allocation13], 0
      %s97 = sshll.u32 %s6, 4
      %s98 = int_to_ptr.hbm [resolvable:$true] %s97
      %s99 = sshll.u32 [#allocation14], 4
      %s100 = int_to_ptr.vmem [resolvable:$true] %s99
      %105 = dma.hbm_to_vmem [thread:$0]  %s98, 4096, %s100, [#allocation13], 256, 256, 16
    $region29: #{fop_weighted_network.1} parent=1 // pred_fallthru
      _
    // Predicated region
    $region30: #{fop_weighted_network.1} parent=1 // pred_check
      _
    $region31: #{fop_weighted_network.1} parent=1 // pred_check_branch
      %107 = sbr.rel (0) target = $region33
    $region32: #{fop_weighted_network.1} parent=1 // pred_region
      %109 = vsyncadd [#allocation16], 0
      %s110 = sshll.u32 %s7, 4
      %s111 = int_to_ptr.hbm [resolvable:$true] %s110
      %s112 = sshll.u32 [#allocation15], 4
      %s113 = int_to_ptr.vmem [resolvable:$true] %s112
      %118 = dma.hbm_to_vmem [thread:$0]  %s111, 4096, %s113, [#allocation16], 256, 256, 16
    $region33: #{fop_weighted_network.1} parent=1 // pred_fallthru
      _
    // Predicated region
    $region34: #{fop_weighted_network.1} parent=1 // pred_check
      _
    $region35: #{fop_weighted_network.1} parent=1 // pred_check_branch
      %120 = sbr.rel (0) target = $region37
    $region36: #{fop_weighted_network.1} parent=1 // pred_region
      _
    $region37: #{fop_weighted_network.1} parent=1 // pred_fallthru
      _
    // Predicated region
    $region38: #{fop_weighted_network.1} parent=1 // pred_check
      _
    $region39: #{fop_weighted_network.1} parent=1 // pred_check_branch
      %122 = sbr.rel (0) target = $region41
    $region40: #{fop_weighted_network.1} parent=1 // pred_region
      _
    $region41: #{fop_weighted_network.1} parent=1 // pred_fallthru
      _
    // Predicated region
    $region42: #{fop_weighted_network.1} parent=1 // pred_check
      _
    $region43: #{fop_weighted_network.1} parent=1 // pred_check_branch
      %124 = sbr.rel (0) target = $region45
    $region44: #{fop_weighted_network.1} parent=1 // pred_region
      _
    $region45: #{fop_weighted_network.1} parent=1 // pred_fallthru
      _
    // Predicated region
    $region46: #{fop_weighted_network.1} parent=1 // pred_check
      _
    $region47: #{fop_weighted_network.1} parent=1 // pred_check_branch
      %126 = sbr.rel (0) target = $region49
    $region48: #{fop_weighted_network.1} parent=1 // pred_region
      %128 = dma.done [#allocation4], 128
    $region49: #{fop_weighted_network.1} parent=1 // pred_fallthru
      _
    // Predicated region
    $region50: #{fop_weighted_network.1} parent=1 // pred_check
      _
    $region51: #{fop_weighted_network.1} parent=1 // pred_check_branch
      %130 = sbr.rel (0) target = $region53
    $region52: #{fop_weighted_network.1} parent=1 // pred_region
      %132 = dma.done [#allocation7], 128
    $region53: #{fop_weighted_network.1} parent=1 // pred_fallthru
      _
    // Predicated region
    $region54: #{fop_weighted_network.1} parent=1 // pred_check
      _
    $region55: #{fop_weighted_network.1} parent=1 // pred_check_branch
      %134 = sbr.rel (0) target = $region57
    $region56: #{fop_weighted_network.1} parent=1 // pred_region
      %136 = dma.done [#allocation7], 512
    $region57: #{fop_weighted_network.1} parent=1 // pred_fallthru
      _
    // Predicated region
    $region58: #{fop_weighted_network.1} parent=1 // pred_check
      _
    $region59: #{fop_weighted_network.1} parent=1 // pred_check_branch
      %138 = sbr.rel (0) target = $region61
    $region60: #{fop_weighted_network.1} parent=1 // pred_region
      %140 = dma.done [#allocation10], 16
    $region61: #{fop_weighted_network.1} parent=1 // pred_fallthru
      _
    // Predicated region
    $region62: #{fop_weighted_network.1} parent=1 // pred_check
      _
    $region63: #{fop_weighted_network.1} parent=1 // pred_check_branch
      %142 = sbr.rel (0) target = $region65
    $region64: #{fop_weighted_network.1} parent=1 // pred_region
      %144 = dma.done [#allocation10], 192
    $region65: #{fop_weighted_network.1} parent=1 // pred_fallthru
      _
    // Predicated region
    $region66: #{fop_weighted_network.1} parent=1 // pred_check
      _
    $region67: #{fop_weighted_network.1} parent=1 // pred_check_branch
      %146 = sbr.rel (0) target = $region69
    $region68: #{fop_weighted_network.1} parent=1 // pred_region
      %148 = dma.done [#allocation13], 16
    $region69: #{fop_weighted_network.1} parent=1 // pred_fallthru
      _
    // Predicated region
    $region70: #{fop_weighted_network.1} parent=1 // pred_check
      _
    $region71: #{fop_weighted_network.1} parent=1 // pred_check_branch
      %150 = sbr.rel (0) target = $region73
    $region72: #{fop_weighted_network.1} parent=1 // pred_region
      %152 = dma.done [#allocation13], 4096
    $region73: #{fop_weighted_network.1} parent=1 // pred_fallthru
      _
    // Predicated region
    $region74: #{fop_weighted_network.1} parent=1 // pred_check
      _
    $region75: #{fop_weighted_network.1} parent=1 // pred_check_branch
      %154 = sbr.rel (0) target = $region77
    $region76: #{fop_weighted_network.1} parent=1 // pred_region
      %156 = dma.done [#allocation16], 4096
    $region77: #{fop_weighted_network.1} parent=1 // pred_fallthru
      _
    %v158 = vld [vmem:[#allocation3] sm:$0xff]
    %v159 = vpack.c.bf16 %v158, %v158
    %v160 = vld [vmem:[#allocation8] sm:$0xf]
    %v161 = vld [vmem:[#allocation8 + $0x4] sm:$0xf]
    %v162 = vld [vmem:[#allocation8 + $0x8] sm:$0xf]
    %v163 = vld [vmem:[#allocation8 + $0xc] sm:$0xf]
    %v164 = vld [vmem:[#allocation8 + $0x10] sm:$0xf]
    %v165 = vld [vmem:[#allocation8 + $0x14] sm:$0xf]
    %v166 = vld [vmem:[#allocation8 + $0x18] sm:$0xf]
    %v167 = vld [vmem:[#allocation8 + $0x1c] sm:$0xf]
    %v168 = vld [vmem:[#allocation9] sm:$0x1]
    %v170 = vperm.slane %v168, 0
    %v180 = vunpack.c.l.b16 %v160
    %v181 = vunpack.c.l.b16 %v161
    %v182 = vunpack.c.l.b16 %v162
    %v183 = vunpack.c.l.b16 %v163
    %v184 = vunpack.c.l.b16 %v164
    %v185 = vunpack.c.l.b16 %v165
    %v186 = vunpack.c.l.b16 %v166
    %v187 = vunpack.c.l.b16 %v167
    %v188 = vpack.c.b16 %v181, %v180
    %v189 = vpack.c.b16 %v183, %v182
    %v190 = vpack.c.b16 %v185, %v184
    %v191 = vpack.c.b16 %v187, %v186
    %vm196 = vcmask 523264
    %v198 = vsel %vm196, %v159, 0
    %200 = vmatpush.bf16.msra.mxu0 0
    %201 = vmatpush.bf16.msra.mxu0 0
    %202 = vmatpush.bf16.msra.mxu0 0
    %203 = vmatpush.bf16.msra.mxu0 0
    %204 = vmatpush.bf16.msra.mxu0 %v191
    %205 = vmatpush.bf16.msra.mxu0 %v190
    %206 = vmatpush.bf16.msra.mxu0 %v189
    %207 = vmatpush.bf16.msra.mxu0 %v188
    %208 = vmatmul.bf16.gmra.mxu0 %v198
    %v209 = vpop.f32.mrf.mxu0
    %v210 = vadd.f32 %v170, %v209
    %v211 = vpop.f32.mrf.mxu0
    %212 = vdwg.mxu0
    %v213 = vmax.f32 %v210, 0.0
    %v214 = vld [vmem:[#allocation6] sm:$0xff]
    %v215 = vpack.c.bf16 %v214, %v214
    %v216 = vld [vmem:[#allocation11] sm:$0xf]
    %v217 = vld [vmem:[#allocation11 + $0x4] sm:$0xf]
    %v218 = vld [vmem:[#allocation11 + $0x8] sm:$0x3]
    %v219 = vld [vmem:[#allocation12] sm:$0x1]
    %v221 = vperm.slane %v219, 0
    %v226 = vunpack.c.l.b16 %v216
    %v227 = vunpack.c.l.b16 %v217
    %v228 = vunpack.c.l.b16 %v218
    %v229 = vpack.c.b16 %v227, %v226
    %v230 = vpack.c.b16 %v228, %v228
    %vm232 = vcmask 162816
    %v234 = vsel %vm232, %v215, 0
    %vm236 = vcmask 1041408
    %v238 = vsel %vm236, %v230, 0
    %240 = vmatpush.bf16.msra.mxu0 0
    %241 = vmatpush.bf16.msra.mxu0 0
    %242 = vmatpush.bf16.msra.mxu0 0
    %243 = vmatpush.bf16.msra.mxu0 0
    %244 = vmatpush.bf16.msra.mxu0 0
    %245 = vmatpush.bf16.msra.mxu0 0
    %246 = vmatpush.bf16.msra.mxu0 %v238
    %247 = vmatpush.bf16.msra.mxu0 %v229
    %248 = vmatmul.bf16.gmra.mxu0 %v234
    %v249 = vpop.f32.mrf.mxu0
    %v250 = vadd.f32 %v221, %v249
    %v251 = vpop.f32.mrf.mxu0
    %252 = vdwg.mxu0
    %v253 = vmax.f32 %v250, 0.0
    %v254 = vpack.c.bf16 %v213, %v213
    %v255 = vld [vmem:[#allocation14] sm:$0xff]
    %v256 = vld [vmem:[#allocation14 + $0x8] sm:$0xff]
    %v257 = vld [vmem:[#allocation14 + $0x10] sm:$0xff]
    %v258 = vld [vmem:[#allocation14 + $0x18] sm:$0xff]
    %v259 = vld [vmem:[#allocation14 + $0x20] sm:$0xff]
    %v260 = vld [vmem:[#allocation14 + $0x28] sm:$0xff]
    %v261 = vld [vmem:[#allocation14 + $0x30] sm:$0xff]
    %v262 = vld [vmem:[#allocation14 + $0x38] sm:$0xff]
    %v263 = vld [vmem:[#allocation14 + $0x40] sm:$0xff]
    %v264 = vld [vmem:[#allocation14 + $0x48] sm:$0xff]
    %v265 = vld [vmem:[#allocation14 + $0x50] sm:$0xff]
    %v266 = vld [vmem:[#allocation14 + $0x58] sm:$0xff]
    %v267 = vld [vmem:[#allocation14 + $0x60] sm:$0xff]
    %v268 = vld [vmem:[#allocation14 + $0x68] sm:$0xff]
    %v269 = vld [vmem:[#allocation14 + $0x70] sm:$0xff]
    %v270 = vld [vmem:[#allocation14 + $0x78] sm:$0xff]
    %v271 = vld [vmem:[#allocation14 + $0x80] sm:$0xff]
    %v272 = vld [vmem:[#allocation14 + $0x88] sm:$0xff]
    %v273 = vld [vmem:[#allocation14 + $0x90] sm:$0xff]
    %v274 = vld [vmem:[#allocation14 + $0x98] sm:$0xff]
    %v275 = vld [vmem:[#allocation14 + $0xa0] sm:$0xff]
    %v276 = vld [vmem:[#allocation14 + $0xa8] sm:$0xff]
    %v277 = vld [vmem:[#allocation14 + $0xb0] sm:$0xff]
    %v278 = vld [vmem:[#allocation14 + $0xb8] sm:$0xff]
    %v279 = vld [vmem:[#allocation14 + $0xc0] sm:$0xff]
    %v280 = vld [vmem:[#allocation14 + $0xc8] sm:$0xff]
    %v281 = vld [vmem:[#allocation14 + $0xd0] sm:$0xff]
    %v282 = vld [vmem:[#allocation14 + $0xd8] sm:$0xff]
    %v283 = vld [vmem:[#allocation14 + $0xe0] sm:$0xff]
    %v284 = vld [vmem:[#allocation14 + $0xe8] sm:$0xff]
    %v285 = vld [vmem:[#allocation14 + $0xf0] sm:$0xff]
    %v286 = vld [vmem:[#allocation14 + $0xf8] sm:$0xff]
    %v287 = vpack.c.bf16 %v253, %v253
    %v288 = vld [vmem:[#allocation15] sm:$0xff]
    %v289 = vld [vmem:[#allocation15 + $0x8] sm:$0xff]
    %v290 = vld [vmem:[#allocation15 + $0x10] sm:$0xff]
    %v291 = vld [vmem:[#allocation15 + $0x18] sm:$0xff]
    %v292 = vld [vmem:[#allocation15 + $0x20] sm:$0xff]
    %v293 = vld [vmem:[#allocation15 + $0x28] sm:$0xff]
    %v294 = vld [vmem:[#allocation15 + $0x30] sm:$0xff]
    %v295 = vld [vmem:[#allocation15 + $0x38] sm:$0xff]
    %v296 = vld [vmem:[#allocation15 + $0x40] sm:$0xff]
    %v297 = vld [vmem:[#allocation15 + $0x48] sm:$0xff]
    %v298 = vld [vmem:[#allocation15 + $0x50] sm:$0xff]
    %v299 = vld [vmem:[#allocation15 + $0x58] sm:$0xff]
    %v300 = vld [vmem:[#allocation15 + $0x60] sm:$0xff]
    %v301 = vld [vmem:[#allocation15 + $0x68] sm:$0xff]
    %v302 = vld [vmem:[#allocation15 + $0x70] sm:$0xff]
    %v303 = vld [vmem:[#allocation15 + $0x78] sm:$0xff]
    %v304 = vld [vmem:[#allocation15 + $0x80] sm:$0xff]
    %v305 = vld [vmem:[#allocation15 + $0x88] sm:$0xff]
    %v306 = vld [vmem:[#allocation15 + $0x90] sm:$0xff]
    %v307 = vld [vmem:[#allocation15 + $0x98] sm:$0xff]
    %v308 = vld [vmem:[#allocation15 + $0xa0] sm:$0xff]
    %v309 = vld [vmem:[#allocation15 + $0xa8] sm:$0xff]
    %v310 = vld [vmem:[#allocation15 + $0xb0] sm:$0xff]
    %v311 = vld [vmem:[#allocation15 + $0xb8] sm:$0xff]
    %v312 = vld [vmem:[#allocation15 + $0xc0] sm:$0xff]
    %v313 = vld [vmem:[#allocation15 + $0xc8] sm:$0xff]
    %v314 = vld [vmem:[#allocation15 + $0xd0] sm:$0xff]
    %v315 = vld [vmem:[#allocation15 + $0xd8] sm:$0xff]
    %v316 = vld [vmem:[#allocation15 + $0xe0] sm:$0xff]
    %v317 = vld [vmem:[#allocation15 + $0xe8] sm:$0xff]
    %v318 = vld [vmem:[#allocation15 + $0xf0] sm:$0xff]
    %v319 = vld [vmem:[#allocation15 + $0xf8] sm:$0xff]
    %v352 = vunpack.c.l.b16 %v288
    %v353 = vunpack.c.h.b16 %v288
    %v354 = vunpack.c.l.b16 %v289
    %v355 = vunpack.c.h.b16 %v289
    %v356 = vunpack.c.l.b16 %v290
    %v357 = vunpack.c.h.b16 %v290
    %v358 = vunpack.c.l.b16 %v291
    %v359 = vunpack.c.h.b16 %v291
    %v360 = vunpack.c.l.b16 %v292
    %v361 = vunpack.c.h.b16 %v292
    %v362 = vunpack.c.l.b16 %v293
    %v363 = vunpack.c.h.b16 %v293
    %v364 = vunpack.c.l.b16 %v294
    %v365 = vunpack.c.h.b16 %v294
    %v366 = vunpack.c.l.b16 %v295
    %v367 = vunpack.c.h.b16 %v295
    %v368 = vunpack.c.l.b16 %v296
    %v369 = vunpack.c.h.b16 %v296
    %v370 = vunpack.c.l.b16 %v297
    %v371 = vunpack.c.h.b16 %v297
    %v372 = vunpack.c.l.b16 %v298
    %v373 = vunpack.c.h.b16 %v298
    %v374 = vunpack.c.l.b16 %v299
    %v375 = vunpack.c.h.b16 %v299
    %v376 = vunpack.c.l.b16 %v300
    %v377 = vunpack.c.h.b16 %v300
    %v378 = vunpack.c.l.b16 %v301
    %v379 = vunpack.c.h.b16 %v301
    %v380 = vunpack.c.l.b16 %v302
    %v381 = vunpack.c.h.b16 %v302
    %v382 = vunpack.c.l.b16 %v303
    %v383 = vunpack.c.h.b16 %v303
    %v384 = vunpack.c.l.b16 %v304
    %v385 = vunpack.c.h.b16 %v304
    %v386 = vunpack.c.l.b16 %v305
    %v387 = vunpack.c.h.b16 %v305
    %v388 = vunpack.c.l.b16 %v306
    %v389 = vunpack.c.h.b16 %v306
    %v390 = vunpack.c.l.b16 %v307
    %v391 = vunpack.c.h.b16 %v307
    %v392 = vunpack.c.l.b16 %v308
    %v393 = vunpack.c.h.b16 %v308
    %v394 = vunpack.c.l.b16 %v309
    %v395 = vunpack.c.h.b16 %v309
    %v396 = vunpack.c.l.b16 %v310
    %v397 = vunpack.c.h.b16 %v310
    %v398 = vunpack.c.l.b16 %v311
    %v399 = vunpack.c.h.b16 %v311
    %v400 = vunpack.c.l.b16 %v312
    %v401 = vunpack.c.h.b16 %v312
    %v402 = vunpack.c.l.b16 %v313
    %v403 = vunpack.c.h.b16 %v313
    %v404 = vunpack.c.l.b16 %v314
    %v405 = vunpack.c.h.b16 %v314
    %v406 = vunpack.c.l.b16 %v315
    %v407 = vunpack.c.h.b16 %v315
    %v408 = vunpack.c.l.b16 %v316
    %v409 = vunpack.c.h.b16 %v316
    %v410 = vunpack.c.l.b16 %v317
    %v411 = vunpack.c.h.b16 %v317
    %v412 = vunpack.c.l.b16 %v318
    %v413 = vunpack.c.h.b16 %v318
    %v414 = vunpack.c.l.b16 %v319
    %v415 = vunpack.c.h.b16 %v319
    %v416 = vpack.c.b16 %v356, %v352
    %v417 = vpack.c.b16 %v357, %v353
    %v418 = vpack.c.b16 %v358, %v354
    %v419 = vpack.c.b16 %v359, %v355
    %v420 = vpack.c.b16 %v364, %v360
    %v421 = vpack.c.b16 %v365, %v361
    %v422 = vpack.c.b16 %v366, %v362
    %v423 = vpack.c.b16 %v367, %v363
    %v424 = vpack.c.b16 %v372, %v368
    %v425 = vpack.c.b16 %v373, %v369
    %v426 = vpack.c.b16 %v374, %v370
    %v427 = vpack.c.b16 %v375, %v371
    %v428 = vpack.c.b16 %v380, %v376
    %v429 = vpack.c.b16 %v381, %v377
    %v430 = vpack.c.b16 %v382, %v378
    %v431 = vpack.c.b16 %v383, %v379
    %v432 = vpack.c.b16 %v388, %v384
    %v433 = vpack.c.b16 %v389, %v385
    %v434 = vpack.c.b16 %v390, %v386
    %v435 = vpack.c.b16 %v391, %v387
    %v436 = vpack.c.b16 %v396, %v392
    %v437 = vpack.c.b16 %v397, %v393
    %v438 = vpack.c.b16 %v398, %v394
    %v439 = vpack.c.b16 %v399, %v395
    %v440 = vpack.c.b16 %v404, %v400
    %v441 = vpack.c.b16 %v405, %v401
    %v442 = vpack.c.b16 %v406, %v402
    %v443 = vpack.c.b16 %v407, %v403
    %v444 = vpack.c.b16 %v412, %v408
    %v445 = vpack.c.b16 %v413, %v409
    %v446 = vpack.c.b16 %v414, %v410
    %v447 = vpack.c.b16 %v415, %v411
    %480 = vmatpush.bf16.msra.mxu0 %v444
    %481 = vmatpush.bf16.msra.mxu0 %v440
    %482 = vmatpush.bf16.msra.mxu0 %v436
    %483 = vmatpush.bf16.msra.mxu0 %v432
    %484 = vmatpush.bf16.msra.mxu0 %v428
    %485 = vmatpush.bf16.msra.mxu0 %v424
    %486 = vmatpush.bf16.msra.mxu0 %v420
    %487 = vmatpush.bf16.msra.mxu0 %v416
    %488 = vmatmul.bf16.gmra.mxu0 %v287
    %v489 = vpop.f32.mrf.mxu0
    %v490 = vadd.f32 0.0, %v489
    %v491 = vpop.f32.mrf.mxu0
    %492 = vdwg.mxu0
    %493 = vmatpush.bf16.msra.mxu0 %v445
    %494 = vmatpush.bf16.msra.mxu0 %v441
    %495 = vmatpush.bf16.msra.mxu0 %v437
    %496 = vmatpush.bf16.msra.mxu0 %v433
    %497 = vmatpush.bf16.msra.mxu0 %v429
    %498 = vmatpush.bf16.msra.mxu0 %v425
    %499 = vmatpush.bf16.msra.mxu0 %v421
    %500 = vmatpush.bf16.msra.mxu0 %v417
    %501 = vmatmul.bf16.gmra.mxu0 %v287
    %v502 = vpop.f32.mrf.mxu0
    %v503 = vadd.f32 0.0, %v502
    %v504 = vpop.f32.mrf.mxu0
    %505 = vdwg.mxu0
    %506 = vmatpush.bf16.msra.mxu0 %v446
    %507 = vmatpush.bf16.msra.mxu0 %v442
    %508 = vmatpush.bf16.msra.mxu0 %v438
    %509 = vmatpush.bf16.msra.mxu0 %v434
    %510 = vmatpush.bf16.msra.mxu0 %v430
    %511 = vmatpush.bf16.msra.mxu0 %v426
    %512 = vmatpush.bf16.msra.mxu0 %v422
    %513 = vmatpush.bf16.msra.mxu0 %v418
    %514 = vmatmul.bf16.gmra.mxu0 %v287
    %v515 = vpop.f32.mrf.mxu0
    %v516 = vadd.f32 0.0, %v515
    %v517 = vpop.f32.mrf.mxu0
    %518 = vdwg.mxu0
    %519 = vmatpush.bf16.msra.mxu0 %v447
    %520 = vmatpush.bf16.msra.mxu0 %v443
    %521 = vmatpush.bf16.msra.mxu0 %v439
    %522 = vmatpush.bf16.msra.mxu0 %v435
    %523 = vmatpush.bf16.msra.mxu0 %v431
    %524 = vmatpush.bf16.msra.mxu0 %v427
    %525 = vmatpush.bf16.msra.mxu0 %v423
    %526 = vmatpush.bf16.msra.mxu0 %v419
    %527 = vmatmul.bf16.gmra.mxu0 %v287
    %v528 = vpop.f32.mrf.mxu0
    %v529 = vadd.f32 0.0, %v528
    %v530 = vpop.f32.mrf.mxu0
    %531 = vdwg.mxu0
    %v564 = vunpack.c.l.b16 %v255
    %v565 = vunpack.c.h.b16 %v255
    %v566 = vunpack.c.l.b16 %v256
    %v567 = vunpack.c.h.b16 %v256
    %v568 = vunpack.c.l.b16 %v257
    %v569 = vunpack.c.h.b16 %v257
    %v570 = vunpack.c.l.b16 %v258
    %v571 = vunpack.c.h.b16 %v258
    %v572 = vunpack.c.l.b16 %v259
    %v573 = vunpack.c.h.b16 %v259
    %v574 = vunpack.c.l.b16 %v260
    %v575 = vunpack.c.h.b16 %v260
    %v576 = vunpack.c.l.b16 %v261
    %v577 = vunpack.c.h.b16 %v261
    %v578 = vunpack.c.l.b16 %v262
    %v579 = vunpack.c.h.b16 %v262
    %v580 = vunpack.c.l.b16 %v263
    %v581 = vunpack.c.h.b16 %v263
    %v582 = vunpack.c.l.b16 %v264
    %v583 = vunpack.c.h.b16 %v264
    %v584 = vunpack.c.l.b16 %v265
    %v585 = vunpack.c.h.b16 %v265
    %v586 = vunpack.c.l.b16 %v266
    %v587 = vunpack.c.h.b16 %v266
    %v588 = vunpack.c.l.b16 %v267
    %v589 = vunpack.c.h.b16 %v267
    %v590 = vunpack.c.l.b16 %v268
    %v591 = vunpack.c.h.b16 %v268
    %v592 = vunpack.c.l.b16 %v269
    %v593 = vunpack.c.h.b16 %v269
    %v594 = vunpack.c.l.b16 %v270
    %v595 = vunpack.c.h.b16 %v270
    %v596 = vunpack.c.l.b16 %v271
    %v597 = vunpack.c.h.b16 %v271
    %v598 = vunpack.c.l.b16 %v272
    %v599 = vunpack.c.h.b16 %v272
    %v600 = vunpack.c.l.b16 %v273
    %v601 = vunpack.c.h.b16 %v273
    %v602 = vunpack.c.l.b16 %v274
    %v603 = vunpack.c.h.b16 %v274
    %v604 = vunpack.c.l.b16 %v275
    %v605 = vunpack.c.h.b16 %v275
    %v606 = vunpack.c.l.b16 %v276
    %v607 = vunpack.c.h.b16 %v276
    %v608 = vunpack.c.l.b16 %v277
    %v609 = vunpack.c.h.b16 %v277
    %v610 = vunpack.c.l.b16 %v278
    %v611 = vunpack.c.h.b16 %v278
    %v612 = vunpack.c.l.b16 %v279
    %v613 = vunpack.c.h.b16 %v279
    %v614 = vunpack.c.l.b16 %v280
    %v615 = vunpack.c.h.b16 %v280
    %v616 = vunpack.c.l.b16 %v281
    %v617 = vunpack.c.h.b16 %v281
    %v618 = vunpack.c.l.b16 %v282
    %v619 = vunpack.c.h.b16 %v282
    %v620 = vunpack.c.l.b16 %v283
    %v621 = vunpack.c.h.b16 %v283
    %v622 = vunpack.c.l.b16 %v284
    %v623 = vunpack.c.h.b16 %v284
    %v624 = vunpack.c.l.b16 %v285
    %v625 = vunpack.c.h.b16 %v285
    %v626 = vunpack.c.l.b16 %v286
    %v627 = vunpack.c.h.b16 %v286
    %v628 = vpack.c.b16 %v568, %v564
    %v629 = vpack.c.b16 %v569, %v565
    %v630 = vpack.c.b16 %v570, %v566
    %v631 = vpack.c.b16 %v571, %v567
    %v632 = vpack.c.b16 %v576, %v572
    %v633 = vpack.c.b16 %v577, %v573
    %v634 = vpack.c.b16 %v578, %v574
    %v635 = vpack.c.b16 %v579, %v575
    %v636 = vpack.c.b16 %v584, %v580
    %v637 = vpack.c.b16 %v585, %v581
    %v638 = vpack.c.b16 %v586, %v582
    %v639 = vpack.c.b16 %v587, %v583
    %v640 = vpack.c.b16 %v592, %v588
    %v641 = vpack.c.b16 %v593, %v589
    %v642 = vpack.c.b16 %v594, %v590
    %v643 = vpack.c.b16 %v595, %v591
    %v644 = vpack.c.b16 %v600, %v596
    %v645 = vpack.c.b16 %v601, %v597
    %v646 = vpack.c.b16 %v602, %v598
    %v647 = vpack.c.b16 %v603, %v599
    %v648 = vpack.c.b16 %v608, %v604
    %v649 = vpack.c.b16 %v609, %v605
    %v650 = vpack.c.b16 %v610, %v606
    %v651 = vpack.c.b16 %v611, %v607
    %v652 = vpack.c.b16 %v616, %v612
    %v653 = vpack.c.b16 %v617, %v613
    %v654 = vpack.c.b16 %v618, %v614
    %v655 = vpack.c.b16 %v619, %v615
    %v656 = vpack.c.b16 %v624, %v620
    %v657 = vpack.c.b16 %v625, %v621
    %v658 = vpack.c.b16 %v626, %v622
    %v659 = vpack.c.b16 %v627, %v623
    %692 = vmatpush.bf16.msra.mxu0 %v656
    %693 = vmatpush.bf16.msra.mxu0 %v652
    %694 = vmatpush.bf16.msra.mxu0 %v648
    %695 = vmatpush.bf16.msra.mxu0 %v644
    %696 = vmatpush.bf16.msra.mxu0 %v640
    %697 = vmatpush.bf16.msra.mxu0 %v636
    %698 = vmatpush.bf16.msra.mxu0 %v632
    %699 = vmatpush.bf16.msra.mxu0 %v628
    %700 = vmatmul.bf16.gmra.mxu0 %v254
    %v701 = vpop.f32.mrf.mxu0
    %v702 = vadd.f32 %v490, %v701
    %v703 = vpop.f32.mrf.mxu0
    %704 = vdwg.mxu0
    %705 = vmatpush.bf16.msra.mxu0 %v657
    %706 = vmatpush.bf16.msra.mxu0 %v653
    %707 = vmatpush.bf16.msra.mxu0 %v649
    %708 = vmatpush.bf16.msra.mxu0 %v645
    %709 = vmatpush.bf16.msra.mxu0 %v641
    %710 = vmatpush.bf16.msra.mxu0 %v637
    %711 = vmatpush.bf16.msra.mxu0 %v633
    %712 = vmatpush.bf16.msra.mxu0 %v629
    %713 = vmatmul.bf16.gmra.mxu0 %v254
    %v714 = vpop.f32.mrf.mxu0
    %v715 = vadd.f32 %v503, %v714
    %v716 = vpop.f32.mrf.mxu0
    %717 = vdwg.mxu0
    %718 = vmatpush.bf16.msra.mxu0 %v658
    %719 = vmatpush.bf16.msra.mxu0 %v654
    %720 = vmatpush.bf16.msra.mxu0 %v650
    %721 = vmatpush.bf16.msra.mxu0 %v646
    %722 = vmatpush.bf16.msra.mxu0 %v642
    %723 = vmatpush.bf16.msra.mxu0 %v638
    %724 = vmatpush.bf16.msra.mxu0 %v634
    %725 = vmatpush.bf16.msra.mxu0 %v630
    %726 = vmatmul.bf16.gmra.mxu0 %v254
    %v727 = vpop.f32.mrf.mxu0
    %v728 = vadd.f32 %v516, %v727
    %v729 = vpop.f32.mrf.mxu0
    %730 = vdwg.mxu0
    %731 = vmatpush.bf16.msra.mxu0 %v659
    %732 = vmatpush.bf16.msra.mxu0 %v655
    %733 = vmatpush.bf16.msra.mxu0 %v651
    %734 = vmatpush.bf16.msra.mxu0 %v647
    %735 = vmatpush.bf16.msra.mxu0 %v643
    %736 = vmatpush.bf16.msra.mxu0 %v639
    %737 = vmatpush.bf16.msra.mxu0 %v635
    %738 = vmatpush.bf16.msra.mxu0 %v631
    %739 = vmatmul.bf16.gmra.mxu0 %v254
    %v740 = vpop.f32.mrf.mxu0
    %v741 = vadd.f32 %v529, %v740
    %v742 = vpop.f32.mrf.mxu0
    %743 = vdwg.mxu0
    %v744 = vld [vmem:[%s8] sm:$0xf]
    %v746 = vperm.slane %v744, 0
    %v747 = vperm.slane %v744, 1
    %v748 = vperm.slane %v744, 2
    %v749 = vperm.slane %v744, 3
    %v754 = vadd.f32 %v702, %v746
    %v755 = vadd.f32 %v715, %v747
    %v756 = vadd.f32 %v728, %v748
    %v757 = vadd.f32 %v741, %v749
    %v758 = vmax.f32 %v754, 0.0
    %v759 = vmax.f32 %v755, 0.0
    %v760 = vmax.f32 %v756, 0.0
    %v761 = vmax.f32 %v757, 0.0
    %v762 = vld [vmem:[%s9] sm:$0xf]
    %v764 = vperm.slane %v762, 0
    %v765 = vperm.slane %v762, 1
    %v766 = vperm.slane %v762, 2
    %v767 = vperm.slane %v762, 3
    %v772 = vmul.f32 %v758, %v764
    %v773 = vmul.f32 %v759, %v765
    %v774 = vmul.f32 %v760, %v766
    %v775 = vmul.f32 %v761, %v767
    %v776 = vadd.f32 %v772, %v773
    %v777 = vadd.f32 %v776, %v774
    %v778 = vadd.f32 %v777, %v775
    %779 = vadd.xlane.f32.xlu0 %v778
    %v780 = vpop.xlane.xlu0 %779
    %781 = vxpose.xlu0.b32.start [1/16] %v780, 128
    %782 = vxpose.xlu0.b32.cont [2/16] 0.0, 128
    %783 = vxpose.xlu0.b32.cont [3/16] 0.0, 128
    %784 = vxpose.xlu0.b32.cont [4/16] 0.0, 128
    %785 = vxpose.xlu0.b32.cont [5/16] 0.0, 128
    %786 = vxpose.xlu0.b32.cont [6/16] 0.0, 128
    %787 = vxpose.xlu0.b32.cont [7/16] 0.0, 128
    %788 = vxpose.xlu0.b32.cont [8/16] 0.0, 128
    %789 = vxpose.xlu0.b32.cont [9/16] 0.0, 128
    %790 = vxpose.xlu0.b32.cont [10/16] 0.0, 128
    %791 = vxpose.xlu0.b32.cont [11/16] 0.0, 128
    %792 = vxpose.xlu0.b32.cont [12/16] 0.0, 128
    %793 = vxpose.xlu0.b32.cont [13/16] 0.0, 128
    %794 = vxpose.xlu0.b32.cont [14/16] 0.0, 128
    %795 = vxpose.xlu0.b32.cont [15/16] 0.0, 128
    %796 = vxpose.xlu0.b32.end [16/16] 0.0, 128
    %v797 = vpop.trf.xlu0
    %v798 = vpop.trf.xlu0
    %v799 = vpop.trf.xlu0
    %v800 = vpop.trf.xlu0
    %v801 = vpop.trf.xlu0
    %v802 = vpop.trf.xlu0
    %v803 = vpop.trf.xlu0
    %v804 = vpop.trf.xlu0
    %v805 = vpop.trf.xlu0
    %v806 = vpop.trf.xlu0
    %v807 = vpop.trf.xlu0
    %v808 = vpop.trf.xlu0
    %v809 = vpop.trf.xlu0
    %v810 = vpop.trf.xlu0
    %v811 = vpop.trf.xlu0
    %v812 = vpop.trf.xlu0
    %s813 = sld [smem:[#allocation2]]
    %v814 = vstv %s813
    %v815 = vadd.f32 %v797, %v814
    %vm816 = vcmask 57344
    %817 = vst.msk [vmem:[#allocation17] sm:$0x1] %vm816, %v815
    // Predicated region
    $region78: #{fop_weighted_network.1} parent=1 // pred_check
      _
    $region79: #{fop_weighted_network.1} parent=1 // pred_check_branch
      %819 = sbr.rel (0) target = $region81
    $region80: #{fop_weighted_network.1} parent=1 // pred_region
      %821 = vsyncadd [#allocation5], 0
      %s823 = sshll.u32 [#allocation17], 4
      %s824 = int_to_ptr.vmem [resolvable:$true] %s823
      %s825 = sshll.u32 %s11, 4
      %s826 = int_to_ptr.hbm [resolvable:$true] %s825
      %828 = dma.vmem_to_hbm [thread:$0]  %s824, 16, %s826, [#allocation5]
    $region81: #{fop_weighted_network.1} parent=1 // pred_fallthru
      _
    // Predicated region
    $region82: #{fop_weighted_network.1} parent=1 // pred_check
      _
    $region83: #{fop_weighted_network.1} parent=1 // pred_check_branch
      %830 = sbr.rel (0) target = $region85
    $region84: #{fop_weighted_network.1} parent=1 // pred_region
      %832 = dma.done [#allocation5], 16
    $region85: #{fop_weighted_network.1} parent=1 // pred_fallthru
      _
    %833 = vsyncpa [#allocation4], 1
    %834 = vsyncpa [#allocation7], 1
    %835 = vsyncpa [#allocation10], 1
    %836 = vsyncpa [#allocation13], 1
    %837 = vsyncpa [#allocation16], 1
    %838 = vsyncpa [#allocation5], 1

</llo_original>
